<compile_context>
chip_gen: v7x
topology: tpu7x:2x2x1
jax: 0.10.0
libtpu: 0.0.40
codegen_flags: <defaults>
</compile_context>

<pallas_src>
import functools

import jax
import jax.numpy as jnp
from jax import lax
from jax.experimental import pallas as pl
from jax.experimental.pallas import tpu as pltpu


def _round_up(x, m):
    return ((x + m - 1) // m) * m


def _cdiv(a, b):
    return (a + b - 1) // b


def _vmem_capacity_bytes():
    """Physical VMEM per TensorCore; conservative 64 MiB (v7x) fallback."""
    try:
        info = pltpu.get_tpu_info()
        for attr in ("vmem_capacity_bytes", "vmem_bytes", "vmem_size_bytes"):
            v = getattr(info, attr, None)
            if v:
                return int(v)
    except Exception:
        pass
    return 64 * 1024 * 1024


def _epilogue(dots_f32, xs, ys, o_ref, *, clamp, use_min):
    # xs already carries 1/temp; clamping the inverse-norm *product* is
    # algebraically identical to PyTorch's  x.y / max(||x||*||y||, eps) / temp.
    prod = xs * ys                                       # [tm,1]*[1,tn] -> [tm,tn]
    scale = jnp.minimum(prod, clamp) if use_min else jnp.maximum(prod, clamp)
    o_ref[...] = (dots_f32 * scale).astype(o_ref.dtype)


def _cos_sim_kernel(x_ref, yt_ref, xs_ref, ys_ref, o_ref, *, clamp, use_min):
    # x_ref: [tm, K], yt_ref: [K, tn]  -- RHS already in natural [K, N] layout.
    dots = lax.dot_general(
        x_ref[...], yt_ref[...],
        dimension_numbers=(((1,), (0,)), ((), ())),
        preferred_element_type=jnp.float32,
    )                                                    # [tm, tn] f32
    _epilogue(dots, xs_ref[...], ys_ref[...], o_ref, clamp=clamp, use_min=use_min)


def _cos_sim_kernel_ksplit(x_ref, yt_ref, xs_ref, ys_ref, o_ref, acc_ref, *,
                           clamp, use_min):
    # Split-K variant: accumulate partial dot products in an f32 VMEM scratch.
    k = pl.program_id(2)

    @pl.when(k == 0)
    def _():
        acc_ref[...] = jnp.zeros_like(acc_ref)

    acc_ref[...] += lax.dot_general(
        x_ref[...], yt_ref[...],
        dimension_numbers=(((1,), (0,)), ((), ())),
        preferred_element_type=jnp.float32,
    )

    @pl.when(k == pl.num_programs(2) - 1)
    def _():
        _epilogue(acc_ref[...], xs_ref[...], ys_ref[...], o_ref,
                  clamp=clamp, use_min=use_min)


def similarity(x, y, temp, *, block_m=None, block_n=None, block_k=None,
               eps=1e-8, compute_dtype=jnp.bfloat16, out_dtype=jnp.float32,
               y_buffer_count=2):
    """Pairwise cosine similarity / temp.

    Accepts x of shape [Bx, 1, H] (or [Bx, H]) and y of shape [1, By, H]
    (or [By, H]); returns the [Bx, By] similarity matrix, matching
    Similarity(temp)(x[:, None, :], y[None, :, :]) in PyTorch.

    compute_dtype: dtype fed to the MXU (default bf16; pass jnp.float32 or
                   None to keep the input dtype for bit-faithful numerics).
    """
    x2 = x.reshape(-1, x.shape[-1])
    y2 = y.reshape(-1, y.shape[-1])
    Bx, H = x2.shape
    By, Hy = y2.shape
    assert H == Hy, "hidden dims of x and y must match"

    if compute_dtype is None:
        compute_dtype = x2.dtype
    in_sz = jnp.dtype(compute_dtype).itemsize
    out_sz = jnp.dtype(out_dtype).itemsize

    # --- per-generation VMEM budget (128 MiB on v5e/v6e, 64 MiB on v7x) ----
    vmem_cap = _vmem_capacity_bytes()
    vmem_budget = int(min(vmem_cap - (16 << 20), int(vmem_cap * 0.8)))

    # --- tile selection ----------------------------------------------------
    tn = block_n if block_n is not None else min(256, _round_up(By, 128))
    if tn % 128 != 0:
        raise ValueError(f"block_n must be a multiple of 128, got {tn}")

    tm_target = block_m if block_m is not None else min(1024, _round_up(Bx, 8))

    if block_k is not None:
        tk = int(block_k)
    else:
        # Prefer split-K over shrinking tm when full-H x+y tiles (double
        # buffered) would eat more than ~half the VMEM budget.
        xy_tile_bytes = 2 * (tm_target + tn) * H * in_sz
        if H <= 512 or xy_tile_bytes <= vmem_budget // 2:
            tk = H
        else:
            tk = max(512, ((vmem_budget // 2)
                           // (2 * (tm_target + tn) * in_sz)) // 512 * 512)
    split_k = (tk != H)
    if split_k and tk % 128 != 0:
        raise ValueError(f"block_k must be a multiple of 128 (or == H), got {tk}")

    def footprint(tm_):
        b = 2 * (tm_ * tk + tk * tn) * in_sz      # double-buffered x / y tiles
        b += 2 * tm_ * tn * out_sz                # double-buffered output tile
        b += 2 * (tm_ + tn) * 4                   # scale vectors
        if split_k:
            b += tm_ * tn * 4                     # f32 accumulator scratch
        return b

    if block_m is not None:
        tm = block_m
    else:
        tm = tm_target
        while tm > 8 and footprint(tm) > vmem_budget:
            tm = _round_up(tm // 2, 8)
        # Ensure >=2 blocks on a 'parallel' axis whenever the batch allows it,
        # so v7x's two TensorCores both get work (negligible cost elsewhere).
        if block_n is None and _cdiv(Bx, tm) == 1 and _cdiv(By, tn) == 1:
            if Bx >= 16:
                tm = _round_up(_cdiv(Bx, 2), 8)
            elif By >= 256:
                tn = _round_up(_cdiv(By, 2), 128)
    if tm % 8 != 0:
        raise ValueError(f"block_m must be a multiple of 8, got {tm}")

    Bxp = _round_up(Bx, tm)
    Byp = _round_up(By, tn)
    Hp = _round_up(H, tk) if split_k else H
    num_k = Hp // tk

    # --- precompute inverse norms (f32), fold 1/temp into the x-row scale --
    inv_temp = 1.0 / float(temp)
    tiny = float(jnp.finfo(jnp.float32).tiny)
    xf = x2.astype(jnp.float32)
    yf = y2.astype(jnp.float32)
    # tiny-clamp avoids inf*0=NaN for exactly-zero rows; the min/max clamp in
    # the kernel then reproduces PyTorch's eps-clamped denominator.
    xn = jnp.maximum(jnp.sqrt(jnp.sum(xf * xf, axis=-1, keepdims=True)), tiny)
    yn = jnp.maximum(jnp.sqrt(jnp.sum(yf * yf, axis=-1, keepdims=True)), tiny)
    x_scale = inv_temp / xn                              # [Bx, 1]
    y_inv = (1.0 / yn).reshape(1, By)                    # [1, By] lane-major
    clamp = inv_temp / eps
    use_min = inv_temp >= 0.0

    # --- MXU operands: compute dtype, RHS pre-transposed to [K, N] ---------
    xc = x2.astype(compute_dtype)                        # [Bx, H]
    yt = y2.astype(compute_dtype).T                      # [H, By]

    # --- pad so the grid covers remainders (zeros don't affect the dots) ---
    if Bxp != Bx:
        xc = jnp.pad(xc, ((0, Bxp - Bx), (0, 0)))
        x_scale = jnp.pad(x_scale, ((0, Bxp - Bx), (0, 0)), constant_values=1.0)
    if Byp != By:
        yt = jnp.pad(yt, ((0, 0), (0, Byp - By)))
        y_inv = jnp.pad(y_inv, ((0, 0), (0, Byp - By)), constant_values=1.0)
    if Hp != H:
        xc = jnp.pad(xc, ((0, 0), (0, Hp - H)))
        yt = jnp.pad(yt, ((0, Hp - H), (0, 0)))

    # --- block specs --------------------------------------------------------
    y_spec_kwargs = {}
    if y_buffer_count != 2:
        # Deeper buffering on the only operand that changes every grid step.
        y_spec_kwargs["pipeline_mode"] = pl.Buffered(y_buffer_count)
    y_spec = pl.BlockSpec((tk, tn), lambda i, j, k: (k, j), **y_spec_kwargs)

    in_specs = [
        pl.BlockSpec((tm, tk), lambda i, j, k: (i, k)),   # x tile (resident in j)
        y_spec,                                           # y^T tile [K, N]
        pl.BlockSpec((tm, 1), lambda i, j, k: (i, 0)),    # (1/temp)/||x||
        pl.BlockSpec((1, tn), lambda i, j, k: (0, j)),    # 1/||y||
    ]
    out_specs = pl.BlockSpec((tm, tn), lambda i, j, k: (i, j))

    if num_k > 1 or split_k:
        kernel = functools.partial(_cos_sim_kernel_ksplit,
                                   clamp=clamp, use_min=use_min)
        scratch_shapes = [pltpu.VMEM((tm, tn), jnp.float32)]
    else:
        kernel = functools.partial(_cos_sim_kernel,
                                   clamp=clamp, use_min=use_min)
        scratch_shapes = []

    out_padded = pl.pallas_call(
        kernel,
        out_shape=jax.ShapeDtypeStruct((Bxp, Byp), out_dtype),
        grid_spec=pltpu.PrefetchScalarGridSpec(
            num_scalar_prefetch=0,
            grid=(Bxp // tm, Byp // tn, num_k),
            in_specs=in_specs,
            out_specs=out_specs,
            scratch_shapes=scratch_shapes,
        ),
        compiler_params=pltpu.CompilerParams(
            dimension_semantics=("parallel", "parallel", "arbitrary"),
            vmem_limit_bytes=int(vmem_budget),
        ),
    )(xc, yt, x_scale, y_inv)

    return out_padded[:Bx, :By]


if __name__ == "__main__":
    key = jax.random.PRNGKey(0)
    kx, ky = jax.random.split(key)

    temp = 0.05  # deterministic "parameter" from __init__(temp)

    def ref_sim(xa, ya, t):
        # Pure-JAX reference with PyTorch cosine_similarity semantics:
        #   x.y / max(||x|| * ||y||, eps) / temp
        xr = xa.reshape(-1, xa.shape[-1]).astype(jnp.float32)
        yr = ya.reshape(-1, ya.shape[-1]).astype(jnp.float32)
        dots = xr @ yr.T
        xn = jnp.linalg.norm(xr, axis=-1, keepdims=True)
        yn = jnp.linalg.norm(yr, axis=-1, keepdims=True)
        return dots / jnp.maximum(xn * yn.T, 1e-8) / t

    # --- canonical small SimCSE-style usage: x [B,1,H], y [1,B,H] -----------
    B, H = 8, 32
    x = jax.random.normal(kx, (B, 1, H), dtype=jnp.float32)
    y = jax.random.normal(ky, (1, B, H), dtype=jnp.float32)
    ref = ref_sim(x, y, temp)

    # exact f32 compute path -> tight tolerance
    out_f32 = jax.block_until_ready(similarity(x, y, temp,
                                               compute_dtype=jnp.float32))
    assert out_f32.shape == (B, B)
    assert jnp.allclose(out_f32, ref, atol=1e-3, rtol=1e-3), (
        f"f32 path max abs err {jnp.max(jnp.abs(out_f32 - ref))}")

    # default path (bf16 MXU inputs, f32 accumulation) -> bf16-level tolerance
    out_def = jax.block_until_ready(similarity(x, y, temp))
    assert out_def.shape == (B, B)
    assert jnp.allclose(out_def, ref, atol=0.25, rtol=2e-2), (
        f"bf16 path max abs err {jnp.max(jnp.abs(out_def - ref))}")

    # --- multi-tile path: padding on all dims + split-K accumulator ---------
    Bx2, By2, H2 = 72, 150, 160
    x2 = jax.random.normal(jax.random.PRNGKey(1), (Bx2, 1, H2), jnp.float32)
    y2 = jax.random.normal(jax.random.PRNGKey(2), (1, By2, H2), jnp.float32)
    ref2 = ref_sim(x2, y2, temp)
    out2 = jax.block_until_ready(
        similarity(x2, y2, temp, compute_dtype=jnp.float32,
                   block_m=32, block_n=128, block_k=128))
    assert out2.shape == (Bx2, By2)
    assert jnp.allclose(out2, ref2, atol=1e-3, rtol=1e-3), (
        f"multi-tile path max abs err {jnp.max(jnp.abs(out2 - ref2))}")

    print("KERNEL_OK")
</pallas_src>

<mosaic_0001>
module attributes {stable_mosaic.version = 11 : i64} {
  func.func @_cos_sim_kernel(%arg0: i32, %arg1: i32, %arg2: i32, %arg3: memref<8x32xf32, #tpu.memory_space<vmem>>, %arg4: memref<32x128xf32, #tpu.memory_space<vmem>>, %arg5: memref<8x1xf32, #tpu.memory_space<vmem>>, %arg6: memref<1x128xf32, #tpu.memory_space<vmem>>, %arg7: memref<8x128xf32, #tpu.memory_space<vmem>>) attributes {dimension_semantics = [#tpu.dimension_semantics<parallel>, #tpu.dimension_semantics<parallel>, #tpu.dimension_semantics<arbitrary>], iteration_bounds = array<i64: 1, 1, 1>, scalar_prefetch = 0 : i64, scratch_operands = 0 : i64, tpu.core_type = #tpu.core_type<tc>, window_params = [{transform_indices = @transform_0, window_bounds = array<i64: 8, 32>}, {transform_indices = @transform_1, window_bounds = array<i64: 32, 128>}, {transform_indices = @transform_2, window_bounds = array<i64: 8, 1>}, {transform_indices = @transform_3, window_bounds = array<i64: 1, 128>}, {transform_indices = @transform_4, window_bounds = array<i64: 8, 128>}]} {
    %c0 = arith.constant 0 : index
    %c0_0 = arith.constant 0 : index
    %0 = vector.load %arg3[%c0, %c0_0] : memref<8x32xf32, #tpu.memory_space<vmem>>, vector<8x32xf32>
    %c0_1 = arith.constant 0 : index
    %c0_2 = arith.constant 0 : index
    %1 = vector.load %arg4[%c0_1, %c0_2] : memref<32x128xf32, #tpu.memory_space<vmem>>, vector<32x128xf32>
    %cst = arith.constant dense<0.000000e+00> : vector<8x128xf32>
    %2 = tpu.matmul %0, %1, %cst {dimension_numbers = #tpu.dot_dimension_numbers<[1], [0], [0], [1], [0, 0, 1, 1], [], []>} : vector<8x32xf32>, vector<32x128xf32>, vector<8x128xf32> -> vector<8x128xf32>
    %c0_3 = arith.constant 0 : index
    %c0_4 = arith.constant 0 : index
    %3 = vector.load %arg5[%c0_3, %c0_4] : memref<8x1xf32, #tpu.memory_space<vmem>>, vector<8x1xf32>
    %c0_5 = arith.constant 0 : index
    %c0_6 = arith.constant 0 : index
    %4 = vector.load %arg6[%c0_5, %c0_6] : memref<1x128xf32, #tpu.memory_space<vmem>>, vector<1x128xf32>
    %5 = vector.broadcast %3 : vector<8x1xf32> to vector<8x128xf32>
    %6 = vector.broadcast %4 : vector<1x128xf32> to vector<8x128xf32>
    %7 = arith.mulf %5, %6 : vector<8x128xf32>
    %cst_7 = arith.constant 2.000000e+09 : f32
    %8 = vector.broadcast %cst_7 : f32 to vector<8x128xf32>
    %9 = arith.minimumf %7, %8 : vector<8x128xf32>
    %10 = arith.mulf %2, %9 : vector<8x128xf32>
    %c0_8 = arith.constant 0 : index
    %c0_9 = arith.constant 0 : index
    %11 = vector.load %arg7[%c0_8, %c0_9] : memref<8x128xf32, #tpu.memory_space<vmem>>, vector<8x128xf32>
    tpu.vector_store %arg7[%c0_8, %c0_9], %10 {strides = array<i32>} : memref<8x128xf32, #tpu.memory_space<vmem>>, vector<8x128xf32>,
    return
  }
  func.func @transform_0(%arg0: i32, %arg1: i32, %arg2: i32) -> (i32, i32) {
    %c0_i32 = arith.constant 0 : i32
    return %arg0, %arg2 : i32, i32
  }
  func.func @transform_1(%arg0: i32, %arg1: i32, %arg2: i32) -> (i32, i32) {
    %c0_i32 = arith.constant 0 : i32
    return %arg2, %arg1 : i32, i32
  }
  func.func @transform_2(%arg0: i32, %arg1: i32, %arg2: i32) -> (i32, i32) {
    %c0_i32 = arith.constant 0 : i32
    %c0_i32_0 = arith.constant 0 : i32
    return %arg0, %c0_i32 : i32, i32
  }
  func.func @transform_3(%arg0: i32, %arg1: i32, %arg2: i32) -> (i32, i32) {
    %c0_i32 = arith.constant 0 : i32
    %c0_i32_0 = arith.constant 0 : i32
    return %c0_i32, %arg1 : i32, i32
  }
  func.func @transform_4(%arg0: i32, %arg1: i32, %arg2: i32) -> (i32, i32) {
    %c0_i32 = arith.constant 0 : i32
    return %arg0, %arg1 : i32, i32
  }
}

</mosaic_0001>

<llo_original>
// kernel: tpu_custom_call.1
$region0: #{tpu_custom_call.1}
  #allocation0 [shape = 'u32[]', space=smem, size = 0x4, offset = 0x4, fixed_abs, tag = 'smem constant byte address 0x4 - core index']
  #allocation1 [shape = 'u32[144,128]{1,0:T(1,128)}', space=vmem, size = 0x12000, scoped, tag = 'internal scratch']
  %s0 = inlined_call_operand.vmem [shape: f32[8,32], index: 0, kind: input, shape index: {}]
  %s1 = inlined_call_operand.hbm [shape: f32[32,128], index: 1, kind: input, shape index: {}]
  %s2 = inlined_call_operand.vmem [shape: f32[8,1], index: 2, kind: input, shape index: {}]
  %s3 = inlined_call_operand.vmem [shape: f32[1,128], index: 3, kind: input, shape index: {}]
  %s4 = inlined_call_operand.hbm [shape: f32[8,128], index: 4, kind: output, shape index: {}]
  %s5 = sld [smem:[#allocation0]]
  $region30: #{tpu_custom_call.1} parent=0
    _
  %s7 = ssub.s32 1, %s5
  %s8 = scalar_select 0, %s7, %s5
  $region1: #{tpu_custom_call.1} parent=0
    #allocation2 [shape = 'u8[16384]{0}', space=vmem, size = 0x4000, scoped, tag = 'input window, operand 1, single buffered']
    #allocation3 [shape = 's32[1]{0}', space=sflag, size = 0x4, scoped, tag = 'scoped memory for tpu_custom_call.1']
    #allocation4 [shape = 's32[1]{0}', space=sflag, size = 0x4, scoped, tag = 'scoped memory for tpu_custom_call.1']
    #allocation5 [shape = 'u8[4096]{0}', space=vmem, size = 0x1000, scoped, tag = 'output window, operand 0, single buffered']
    %9 = vsyncpa [#allocation3], 0
    %10 = vsyncpa [#allocation4], 0
    // Predicated region
    $region2: #{tpu_custom_call.1} parent=1 // pred_check
      _
    $region3: #{tpu_custom_call.1} parent=1 // pred_check_branch
      %12 = sbr.rel (0) target = $region5
    $region4: #{tpu_custom_call.1} parent=1 // pred_region
      _
    $region5: #{tpu_custom_call.1} parent=1 // pred_fallthru
      _
    // Predicated region
    $region6: #{tpu_custom_call.1} parent=1 // pred_check
      _
    $region7: #{tpu_custom_call.1} parent=1 // pred_check_branch
      %14 = sbr.rel (0) target = $region9
    $region8: #{tpu_custom_call.1} parent=1 // pred_region
      %s16 = ssub.s32 512, 512
      %17 = vsyncadd [#allocation3], %s16
      %s18 = sshll.u32 [#allocation2], 4
      %s19 = int_to_ptr.vmem [resolvable:$true] %s18
      %24 = dma.hbm_to_vmem [thread:$0]  %s1, 512, %s19, [#allocation3], 128, 128, 8
    $region9: #{tpu_custom_call.1} parent=1 // pred_fallthru
      _
    // Predicated region
    $region10: #{tpu_custom_call.1} parent=1 // pred_check
      _
    $region11: #{tpu_custom_call.1} parent=1 // pred_check_branch
      %26 = sbr.rel (0) target = $region13
    $region12: #{tpu_custom_call.1} parent=1 // pred_region
      _
    $region13: #{tpu_custom_call.1} parent=1 // pred_fallthru
      _
    // Predicated region
    $region14: #{tpu_custom_call.1} parent=1 // pred_check
      _
    $region15: #{tpu_custom_call.1} parent=1 // pred_check_branch
      %28 = sbr.rel (0) target = $region17
    $region16: #{tpu_custom_call.1} parent=1 // pred_region
      _
    $region17: #{tpu_custom_call.1} parent=1 // pred_fallthru
      _
    // Predicated region
    $region18: #{tpu_custom_call.1} parent=1 // pred_check
      _
    $region19: #{tpu_custom_call.1} parent=1 // pred_check_branch
      %30 = sbr.rel (0) target = $region21
    $region20: #{tpu_custom_call.1} parent=1 // pred_region
      %31 = dma.done [#allocation3], 512
    $region21: #{tpu_custom_call.1} parent=1 // pred_fallthru
      _
    %v32 = vld [vmem:[%s0] sm:$0xff]
    %v33 = vld [vmem:[#allocation2] sm:$0xff]
    %v34 = vld [vmem:[#allocation2 + $0x8] sm:$0xff]
    %v35 = vld [vmem:[#allocation2 + $0x10] sm:$0xff]
    %v36 = vld [vmem:[#allocation2 + $0x18] sm:$0xff]
    %vm37 = vcmask 261120
    %v39 = vsel %vm37, %v32, 0
    %41 = vmatprep.subr.mxu0 0.0
    %42 = vmatpush1.msra.mxu0 %v33
    %43 = vmatprep.subr.mxu0 0.0
    %44 = vmatpush1.msra.mxu0 %v34
    %45 = vmatprep.subr.mxu0 0.0
    %46 = vmatpush1.msra.mxu0 %v35
    %47 = vmatprep.subr.mxu0 0.0
    %48 = vmatpush1.msra.mxu0 %v36
    %49 = vmatprep.subr.mxu0 0.0
    %50 = vmatpush1.msra.mxu0 0.0
    %51 = vmatprep.subr.mxu0 0.0
    %52 = vmatpush1.msra.mxu0 0.0
    %53 = vmatprep.subr.mxu0 0.0
    %54 = vmatpush1.msra.mxu0 0.0
    %55 = vmatprep.subr.mxu0 0.0
    %56 = vmatpush1.msra.mxu0 0.0
    %57 = vmatprep.subr.mxu0 0.0
    %58 = vmatpush1.msra.mxu0 0.0
    %59 = vmatprep.subr.mxu0 0.0
    %60 = vmatpush1.msra.mxu0 0.0
    %61 = vmatprep.subr.mxu0 0.0
    %62 = vmatpush1.msra.mxu0 0.0
    %63 = vmatprep.subr.mxu0 0.0
    %64 = vmatpush1.msra.mxu0 0.0
    %65 = vmatprep.subr.mxu0 0.0
    %66 = vmatpush1.msra.mxu0 0.0
    %67 = vmatprep.subr.mxu0 0.0
    %68 = vmatpush1.msra.mxu0 0.0
    %69 = vmatprep.subr.mxu0 0.0
    %70 = vmatpush1.msra.mxu0 0.0
    %71 = vmatprep.subr.mxu0 0.0
    %72 = vmatpush1.msra.mxu0 0.0
    %73 = vmatprep.subr.mxu0 0.0
    %74 = vmatpush1.msra.mxu0 0.0
    %75 = vmatprep.subr.mxu0 0.0
    %76 = vmatpush1.msra.mxu0 0.0
    %77 = vmatprep.subr.mxu0 0.0
    %78 = vmatpush1.msra.mxu0 0.0
    %79 = vmatprep.subr.mxu0 0.0
    %80 = vmatpush1.msra.mxu0 0.0
    %81 = vmatprep.subr.mxu0 0.0
    %82 = vmatpush1.msra.mxu0 0.0
    %83 = vmatprep.subr.mxu0 0.0
    %84 = vmatpush1.msra.mxu0 0.0
    %85 = vmatprep.subr.mxu0 0.0
    %86 = vmatpush1.msra.mxu0 0.0
    %87 = vmatprep.subr.mxu0 0.0
    %88 = vmatpush1.msra.mxu0 0.0
    %89 = vmatprep.subr.mxu0 0.0
    %90 = vmatpush1.msra.mxu0 0.0
    %91 = vmatprep.subr.mxu0 0.0
    %92 = vmatpush1.msra.mxu0 0.0
    %93 = vmatprep.subr.mxu0 0.0
    %94 = vmatpush1.msra.mxu0 0.0
    %95 = vmatprep.subr.mxu0 0.0
    %96 = vmatpush1.msra.mxu0 0.0
    %97 = vmatprep.subr.mxu0 0.0
    %98 = vmatpush1.msra.mxu0 0.0
    %99 = vmatprep.subr.mxu0 0.0
    %100 = vmatpush1.msra.mxu0 0.0
    %101 = vmatprep.subr.mxu0 0.0
    %102 = vmatpush1.msra.mxu0 0.0
    %103 = vmatprep.subr.mxu0 0.0
    %104 = vmatpush1.msra.mxu0 0.0
    %105 = vmatprep.mubr.f32.mxu0 0.0
    %106 = vmatmul.mubr.f32.gmra.mrb[0].mxu0 %v39
    %v107 = vpop.f32.mrb[0].mxu0
    %v108 = vadd.f32 0.0, %v107
    %v109 = vpop.f32.mrb[0].mxu0
    %110 = vdwg.mxu0
    %v111 = vld [vmem:[%s2] sm:$0xff]
    %v112 = vld [vmem:[%s3] sm:$0x1]
    %114 = vset.pattern.permute.xlu0 0
    %115 = vperm.xlu0 %114, %v111
    %v116 = vpop.permute.xlu0 %115
    %v119 = vlaneseq
    %v120 = vshrl.u32 %v119, 7
    %v121 = vsub.s32 0, %v120
    %v122 = vrot.slane %v112, %v121
    %v124 = vmul.f32 %v116, %v122
    %v125 = vmin.f32 %v124, 2e+09
    %v126 = vmul.f32 %v108, %v125
    %127 = vst [vmem:[#allocation5] sm:$0xff] %v126
    // Predicated region
    $region22: #{tpu_custom_call.1} parent=1 // pred_check
      _
    $region23: #{tpu_custom_call.1} parent=1 // pred_check_branch
      %129 = sbr.rel (0) target = $region25
    $region24: #{tpu_custom_call.1} parent=1 // pred_region
      %s131 = ssub.s32 128, 128
      %132 = vsyncadd [#allocation4], %s131
      %s134 = sshll.u32 [#allocation5], 4
      %s135 = int_to_ptr.vmem [resolvable:$true] %s134
      %137 = dma.vmem_to_hbm [thread:$0]  %s135, 128, %s4, [#allocation4]
    $region25: #{tpu_custom_call.1} parent=1 // pred_fallthru
      _
    // Predicated region
    $region26: #{tpu_custom_call.1} parent=1 // pred_check
      _
    $region27: #{tpu_custom_call.1} parent=1 // pred_check_branch
      %139 = sbr.rel (0) target = $region29
    $region28: #{tpu_custom_call.1} parent=1 // pred_region
      %140 = dma.done [#allocation4], 128
    $region29: #{tpu_custom_call.1} parent=1 // pred_fallthru
      _
    %141 = vsyncpa [#allocation3], 1
    %142 = vsyncpa [#allocation4], 1

</llo_original>
